<compile_context>
chip_gen: v7x
topology: tpu7x:2x2x1
jax: 0.10.0
libtpu: 0.0.40
codegen_flags: <defaults>
</compile_context>

<pallas_src>
import jax
import jax.numpy as jnp
from jax import lax
from jax.experimental import pallas as pl
from jax.experimental.pallas import tpu as pltpu

_VMEM_LIMIT = 48 * 1024 * 1024   # safe on v5e/v6e (128 MiB) and v7x (64 MiB physical)


# --------------------------------------------------------------------------------------
# Kernel 1: normalized similarity scores + per-row max / first-argmax (batch-tiled)
# --------------------------------------------------------------------------------------
def _scores_kernel(a_ref, b_ref, nmax_ref, nidx_ref):
    # a_ref: (Bt, T1, D), b_ref: (Bt, T2, D) -- Bt batch elements per grid step.
    a = a_ref[...].astype(jnp.float32)
    b = b_ref[...].astype(jnp.float32)
    # 1e-12 epsilon only diverges from the reference's exact divide for near-zero rows.
    inv_na = lax.rsqrt(jnp.sum(a * a, axis=-1, keepdims=True) + 1e-12)   # EUP rsqrt
    inv_nb = lax.rsqrt(jnp.sum(b * b, axis=-1, keepdims=True) + 1e-12)
    # Feed the MXU in the input's native dtype (bf16 stays bf16), accumulate in f32.
    an = (a * inv_na).astype(a_ref.dtype)
    bn = (b * inv_nb).astype(b_ref.dtype)
    scores = jnp.einsum("btd,bsd->bts", an, bn,
                        preferred_element_type=jnp.float32)              # (Bt, T1, T2)
    t2 = scores.shape[-1]
    mx = jnp.max(scores, axis=-1)                                        # (Bt, T1)
    col = lax.broadcasted_iota(jnp.int32, scores.shape, 2)
    idx = jnp.min(jnp.where(scores >= mx[..., None], col, t2), axis=-1)  # first argmax
    nmax_ref[...] = mx                                                   # lane-dense
    nidx_ref[...] = idx.astype(jnp.int32)


def _scores_batch_tile(B, T1, T2, D, item, budget=16 * 1024 * 1024):
    """Largest batch tile that divides B, keeps the per-step working set under budget,
    and keeps the 2-D (bt, T1) output blocks legal (bt == B or bt % 8 == 0)."""
    def step_bytes(bt):
        # double-buffered metric tiles + f32 score matrix + int32 argmax temps + outputs
        return bt * (2 * (T1 + T2) * D * item + 3 * T1 * T2 * 4 + 2 * T1 * 4)
    cands = [B] + [bt for bt in (64, 32, 16, 8) if bt < B and B % bt == 0]
    for bt in cands:
        if step_bytes(bt) <= budget:
            return bt
    return cands[-1]   # pathological shapes only; see TODO on K-tiling above


def _scores_pallas(a, b):
    B, T1, D = a.shape
    T2 = b.shape[1]
    bt = _scores_batch_tile(B, T1, T2, D, a.dtype.itemsize)
    nmax, nidx = pl.pallas_call(
        _scores_kernel,
        out_shape=(jax.ShapeDtypeStruct((B, T1), jnp.float32),
                   jax.ShapeDtypeStruct((B, T1), jnp.int32)),
        grid=(B // bt,),
        in_specs=[pl.BlockSpec((bt, T1, D), lambda i: (i, 0, 0)),
                  pl.BlockSpec((bt, T2, D), lambda i: (i, 0, 0))],
        out_specs=(pl.BlockSpec((bt, T1), lambda i: (i, 0)),
                   pl.BlockSpec((bt, T1), lambda i: (i, 0))),
        compiler_params=pltpu.CompilerParams(
            dimension_semantics=("parallel",),
            vmem_limit_bytes=_VMEM_LIMIT),
    )(a, b)
    return nmax, nidx   # (B, T1) each


# --------------------------------------------------------------------------------------
# Kernel 2: merge_wavg hot path:  out = (A @ x) * inv_size   (batch tiles x channel tiles)
# --------------------------------------------------------------------------------------
def _merge_kernel(a_ref, x_ref, inv_ref, o_ref):
    # a_ref: (Bt, Nout, N) in x.dtype, x_ref: (Bt, N, TC), inv_ref: (Bt, Nout, 1) f32.
    y = jnp.einsum("bmn,bnc->bmc", a_ref[...], x_ref[...],
                   preferred_element_type=jnp.float32)                   # (Bt, Nout, TC)
    o_ref[...] = (y * inv_ref[...]).astype(o_ref.dtype)


def _merge_tiles(B, Nout, N, C, a_item, x_item, budget=20 * 1024 * 1024):
    """Pick (batch_tile, channel_tile): prefer full C (A streamed once per batch tile),
    then the largest batch tile (<=16) dividing B that keeps the step under budget."""
    c_tiles = [C] + [tc for tc in (2048, 1024, 512, 256, 128) if tc < C and C % tc == 0]

    def step_bytes(bt, tc):
        return bt * (Nout * N * a_item + N * tc * x_item
                     + Nout * tc * x_item + Nout * 4 + Nout * tc * 4)

    for tc in c_tiles:
        for bt in range(min(B, 16), 0, -1):
            if B % bt == 0 and step_bytes(bt, tc) <= budget:
                return bt, tc
    # TODO(synk): if even (1, smallest tc) misses the budget (huge N), K-tile A over N
    # with an f32 accumulator scratch and an 'arbitrary' reduction axis.
    return 1, c_tiles[-1]


def _merge_pallas(A, x, inv_size):
    B, Nout, N = A.shape
    C = x.shape[-1]
    bt, tc = _merge_tiles(B, Nout, N, C, A.dtype.itemsize, x.dtype.itemsize)
    return pl.pallas_call(
        _merge_kernel,
        out_shape=jax.ShapeDtypeStruct((B, Nout, C), x.dtype),
        grid=(B // bt, C // tc),
        in_specs=[pl.BlockSpec((bt, Nout, N), lambda i, j: (i, 0, 0)),
                  pl.BlockSpec((bt, N, tc), lambda i, j: (i, 0, j)),
                  pl.BlockSpec((bt, Nout, 1), lambda i, j: (i, 0, 0))],
        out_specs=pl.BlockSpec((bt, Nout, tc), lambda i, j: (i, 0, j)),
        compiler_params=pltpu.CompilerParams(
            dimension_semantics=("parallel", "parallel"),
            vmem_limit_bytes=_VMEM_LIMIT),
    )(A, x, inv_size)


# --------------------------------------------------------------------------------------
# Forward (glue + kernels)
# --------------------------------------------------------------------------------------
def token_merging_forward(x, metric, r, class_token=False, distill_token=False):
    """Equivalent of TokenMerging.forward (class_token=False, distill_token=False)."""
    assert not class_token and not distill_token  # module config hard-codes these to False
    B, N, C = x.shape
    protected = int(class_token) + int(distill_token)
    r = min(int(r), (N - protected) // 2)
    if r <= 0:
        return x

    a = metric[:, ::2, :]        # even tokens ("src" side)
    b = metric[:, 1::2, :]       # odd tokens ("dst" side)
    T1, T2 = a.shape[1], b.shape[1]

    node_max, node_idx = _scores_pallas(a, b)

    # Top-r edge selection (sorting) -- plain JAX glue, no Pallas sort primitive.
    # NOTE: jnp.argsort is stable; torch descending argsort is not (tie behavior only).
    edge_idx = jnp.argsort(-node_max, axis=-1)                     # descending
    unm_idx = edge_idx[:, r:]                                      # (B, T1 - r)
    src_idx = edge_idx[:, :r]                                      # (B, r)
    dst_idx = jnp.take_along_axis(node_idx, src_idx, axis=-1)      # (B, r)

    n_unm = T1 - r
    Nout = N - r

    # Build A directly in x.dtype (entries are small integers, exact in bf16 up to 256).
    build_dtype = x.dtype
    if jnp.issubdtype(x.dtype, jnp.floating) and jnp.finfo(x.dtype).bits < 32 and (r + 1) > 256:
        build_dtype = jnp.float32   # safety fallback: counts could exceed bf16 exactness

    # Scatter-based construction of the merge matrix A (Nout x N) and merged sizes.
    #   - unmerged rows: e_{2*unm_idx}
    #   - dst rows:      e_{2*t+1} + sum over merged src mapping to t of e_{2*src_idx}
    def _build_one(unm, src, dst):
        A = jnp.zeros((Nout, N), build_dtype)
        A = A.at[jnp.arange(n_unm), 2 * unm].set(1)
        A = A.at[n_unm + jnp.arange(T2), 2 * jnp.arange(T2) + 1].set(1)
        A = A.at[n_unm + dst, 2 * src].add(1)
        dst_sizes = jnp.ones((T2,), jnp.float32).at[dst].add(1.0)
        return A, dst_sizes

    A, dst_sizes = jax.vmap(_build_one)(unm_idx, src_idx, dst_idx)      # (B,Nout,N),(B,T2)
    sizes = jnp.concatenate([jnp.ones((B, n_unm), jnp.float32), dst_sizes], axis=1)
    inv_size = (1.0 / sizes)[..., None]                                 # (B, Nout, 1) f32

    if A.dtype != x.dtype:
        A = A.astype(x.dtype)
    return _merge_pallas(A, x, inv_size)


class TokenMerging:
    """Thin stateless wrapper mirroring the PyTorch module interface."""

    def __init__(self, r=0, trace_source=False, prop_attn=True):
        self.r = r
        self.trace_source = trace_source
        self.prop_attn = prop_attn
        self._tome_info = {"r": r, "size": None, "source": None,
                           "trace_source": trace_source, "prop_attn": prop_attn,
                           "class_token": False, "distill_token": False}

    def __call__(self, x, metric):
        self._tome_info["source"] = None
        self._tome_info["size"] = None
        if self._tome_info["r"] > 0:
            x = token_merging_forward(x, metric, self._tome_info["r"])
        return x


# --------------------------------------------------------------------------------------
# Pure-JAX reference (mirrors the PyTorch bipartite_soft_matching + merge_wavg)
# --------------------------------------------------------------------------------------
def _reference_forward(x, metric, r):
    B, N, C = x.shape
    r = min(int(r), N // 2)
    if r <= 0:
        return x
    m = metric / jnp.sqrt(jnp.sum(metric * metric, axis=-1, keepdims=True))
    a, b = m[:, ::2], m[:, 1::2]
    scores = jnp.einsum("btd,bsd->bts", a, b)
    node_max = scores.max(-1)
    node_idx = scores.argmax(-1)
    edge_idx = jnp.argsort(-node_max, axis=-1)
    unm_idx, src_idx = edge_idx[:, r:], edge_idx[:, :r]
    dst_idx = jnp.take_along_axis(node_idx, src_idx, axis=-1)

    def merge_sum(v):
        vs, vd = v[:, ::2], v[:, 1::2]
        unm = jnp.take_along_axis(vs, unm_idx[..., None], axis=1)
        src = jnp.take_along_axis(vs, src_idx[..., None], axis=1)
        dst = jax.vmap(lambda d, di, s: d.at[di].add(s))(vd, dst_idx, src)
        return jnp.concatenate([unm, dst], axis=1)

    size = jnp.ones((B, N, 1), x.dtype)
    xs = merge_sum(x * size)
    ss = merge_sum(size)
    return xs / ss


if __name__ == "__main__":
    key = jax.random.PRNGKey(0)

    # Test 1: small f32 shapes.
    B, N, C, D, r = 2, 8, 32, 16, 2
    kx, km, kx2, km2 = jax.random.split(key, 4)
    x = jax.random.normal(kx, (B, N, C), dtype=jnp.float32)
    metric = jax.random.normal(km, (B, N, D), dtype=jnp.float32)
    out = jax.block_until_ready(TokenMerging(r=r)(x, metric))
    assert out.shape == (B, N - r, C), out.shape
    ref = _reference_forward(x, metric, r)
    assert bool(jnp.allclose(out, ref, atol=1e-4, rtol=1e-4)), "mismatch vs reference (f32 #1)"

    # Test 2: slightly larger, exercises multi-batch tiles.
    B2, N2, C2, D2, r2 = 4, 16, 64, 32, 3
    x2 = jax.random.normal(kx2, (B2, N2, C2), dtype=jnp.float32)
    metric2 = jax.random.normal(km2, (B2, N2, D2), dtype=jnp.float32)
    out2 = jax.block_until_ready(TokenMerging(r=r2)(x2, metric2))
    assert out2.shape == (B2, N2 - r2, C2), out2.shape
    ref2 = _reference_forward(x2, metric2, r2)
    assert bool(jnp.allclose(out2, ref2, atol=1e-4, rtol=1e-4)), "mismatch vs reference (f32 #2)"

    # Test 3: bf16 path (exercises bf16 MXU + bf16 A); shape / finiteness check only,
    # since near-tie edge selection may legitimately differ from the f32 reference.
    out3 = jax.block_until_ready(
        TokenMerging(r=r2)(x2.astype(jnp.bfloat16), metric2.astype(jnp.bfloat16)))
    assert out3.shape == (B2, N2 - r2, C2), out3.shape
    assert bool(jnp.all(jnp.isfinite(out3.astype(jnp.float32)))), "non-finite bf16 output"

    print("KERNEL_OK")
</pallas_src>

<mosaic_0001>
module attributes {stable_mosaic.version = 11 : i64} {
  func.func @_scores_kernel(%arg0: i32, %arg1: memref<2x4x16xf32, #tpu.memory_space<vmem>>, %arg2: memref<2x4x16xf32, #tpu.memory_space<vmem>>, %arg3: memref<2x4xf32, #tpu.memory_space<vmem>>, %arg4: memref<2x4xi32, #tpu.memory_space<vmem>>) attributes {dimension_semantics = [#tpu.dimension_semantics<parallel>], iteration_bounds = array<i64: 1>, scalar_prefetch = 0 : i64, scratch_operands = 0 : i64, tpu.core_type = #tpu.core_type<tc>, window_params = [{transform_indices = @transform_0, window_bounds = array<i64: 2, 4, 16>}, {transform_indices = @transform_1, window_bounds = array<i64: 2, 4, 16>}, {transform_indices = @transform_2, window_bounds = array<i64: 2, 4>}, {transform_indices = @transform_3, window_bounds = array<i64: 2, 4>}]} {
    %c0 = arith.constant 0 : index
    %c0_0 = arith.constant 0 : index
    %c0_1 = arith.constant 0 : index
    %0 = vector.load %arg1[%c0, %c0_0, %c0_1] : memref<2x4x16xf32, #tpu.memory_space<vmem>>, vector<2x4x16xf32>
    %c0_2 = arith.constant 0 : index
    %c0_3 = arith.constant 0 : index
    %c0_4 = arith.constant 0 : index
    %1 = vector.load %arg2[%c0_2, %c0_3, %c0_4] : memref<2x4x16xf32, #tpu.memory_space<vmem>>, vector<2x4x16xf32>
    %2 = arith.mulf %0, %0 : vector<2x4x16xf32>
    %cst = arith.constant dense<0.000000e+00> : vector<2x4xf32>
    %3 = vector.multi_reduction <add>, %2, %cst [2] : vector<2x4x16xf32> to vector<2x4xf32>
    %4 = vector.shape_cast %3 : vector<2x4xf32> to vector<2x4x1xf32>
    %cst_5 = arith.constant 9.99999996E-13 : f32
    %5 = vector.broadcast %cst_5 : f32 to vector<2x4x1xf32>
    %6 = arith.addf %4, %5 : vector<2x4x1xf32>
    %7 = math.rsqrt %6 : vector<2x4x1xf32>
    %8 = arith.mulf %1, %1 : vector<2x4x16xf32>
    %cst_6 = arith.constant dense<0.000000e+00> : vector<2x4xf32>
    %9 = vector.multi_reduction <add>, %8, %cst_6 [2] : vector<2x4x16xf32> to vector<2x4xf32>
    %10 = vector.shape_cast %9 : vector<2x4xf32> to vector<2x4x1xf32>
    %cst_7 = arith.constant 9.99999996E-13 : f32
    %11 = vector.broadcast %cst_7 : f32 to vector<2x4x1xf32>
    %12 = arith.addf %10, %11 : vector<2x4x1xf32>
    %13 = math.rsqrt %12 : vector<2x4x1xf32>
    %14 = vector.broadcast %7 : vector<2x4x1xf32> to vector<2x4x16xf32>
    %15 = arith.mulf %0, %14 : vector<2x4x16xf32>
    %16 = vector.broadcast %13 : vector<2x4x1xf32> to vector<2x4x16xf32>
    %17 = arith.mulf %1, %16 : vector<2x4x16xf32>
    "tpu.trace_start"() <{level = 10 : i32, message = "btd,bsd->bts"}> : () -> ()
    %cst_8 = arith.constant dense<0.000000e+00> : vector<2x4x4xf32>
    %18 = tpu.matmul %15, %17, %cst_8 {dimension_numbers = #tpu.dot_dimension_numbers<[2], [2], [1], [1], [0, 0, 0, 1, 1, 1], [0], [0]>} : vector<2x4x16xf32>, vector<2x4x16xf32>, vector<2x4x4xf32> -> vector<2x4x4xf32>
    "tpu.trace_stop"() : () -> ()
    %cst_9 = arith.constant dense<0xFF800000> : vector<2x4xf32>
    %19 = vector.multi_reduction <maximumf>, %18, %cst_9 [2] : vector<2x4x4xf32> to vector<2x4xf32>
    %20 = tpu.iota {dimensions = array<i32: 2>} : vector<2x4x4xi32>
    %21 = vector.shape_cast %19 : vector<2x4xf32> to vector<2x4x1xf32>
    %22 = vector.broadcast %21 : vector<2x4x1xf32> to vector<2x4x4xf32>
    %23 = arith.cmpf oge, %18, %22 : vector<2x4x4xf32>
    %c4_i32 = arith.constant 4 : i32
    %24 = vector.broadcast %c4_i32 : i32 to vector<2x4x4xi32>
    %25 = arith.select %23, %20, %24 : vector<2x4x4xi1>, vector<2x4x4xi32>
    %cst_10 = arith.constant dense<2147483647> : vector<2x4xi32>
    %26 = vector.multi_reduction <minsi>, %25, %cst_10 [2] : vector<2x4x4xi32> to vector<2x4xi32>
    %c0_11 = arith.constant 0 : index
    %c0_12 = arith.constant 0 : index
    %27 = vector.load %arg3[%c0_11, %c0_12] : memref<2x4xf32, #tpu.memory_space<vmem>>, vector<2x4xf32>
    tpu.vector_store %arg3[%c0_11, %c0_12], %19 {strides = array<i32>} : memref<2x4xf32, #tpu.memory_space<vmem>>, vector<2x4xf32>,
    %c0_13 = arith.constant 0 : index
    %c0_14 = arith.constant 0 : index
    %28 = vector.load %arg4[%c0_13, %c0_14] : memref<2x4xi32, #tpu.memory_space<vmem>>, vector<2x4xi32>
    tpu.vector_store %arg4[%c0_13, %c0_14], %26 {strides = array<i32>} : memref<2x4xi32, #tpu.memory_space<vmem>>, vector<2x4xi32>,
    return
  }
  func.func @transform_0(%arg0: i32) -> (i32, i32, i32) {
    %c0_i32 = arith.constant 0 : i32
    %c0_i32_0 = arith.constant 0 : i32
    %c0_i32_1 = arith.constant 0 : i32
    return %arg0, %c0_i32, %c0_i32_0 : i32, i32, i32
  }
  func.func @transform_1(%arg0: i32) -> (i32, i32, i32) {
    %c0_i32 = arith.constant 0 : i32
    %c0_i32_0 = arith.constant 0 : i32
    %c0_i32_1 = arith.constant 0 : i32
    return %arg0, %c0_i32, %c0_i32_0 : i32, i32, i32
  }
  func.func @transform_2(%arg0: i32) -> (i32, i32) {
    %c0_i32 = arith.constant 0 : i32
    %c0_i32_0 = arith.constant 0 : i32
    return %arg0, %c0_i32 : i32, i32
  }
  func.func @transform_3(%arg0: i32) -> (i32, i32) {
    %c0_i32 = arith.constant 0 : i32
    %c0_i32_0 = arith.constant 0 : i32
    return %arg0, %c0_i32 : i32, i32
  }
}

</mosaic_0001>

<llo_original>
// kernel: tpu_custom_call.1
$region0: #{tpu_custom_call.1}
  #allocation0 [shape = 'u32[]', space=smem, size = 0x4, offset = 0x4, fixed_abs, tag = 'smem constant byte address 0x4 - core index']
  #allocation1 [shape = 'u32[144,128]{1,0:T(1,128)}', space=vmem, size = 0x12000, scoped, tag = 'internal scratch']
  %s0 = inlined_call_operand.hbm [shape: f32[2,4,16], index: 0, kind: input, shape index: {}]
  %s1 = inlined_call_operand.hbm [shape: f32[2,4,16], index: 1, kind: input, shape index: {}]
  %s2 = inlined_call_operand.hbm [shape: f32[2,4], index: 2, kind: output, shape index: {0}]
  %s3 = inlined_call_operand.hbm [shape: s32[2,4], index: 3, kind: output, shape index: {1}]
  %4 = xla_tuple %s2, %s3
  %s5 = sld [smem:[#allocation0]]
  $region34: #{tpu_custom_call.1} parent=0
    _
  %s7 = ssub.s32 1, %s5
  %s8 = scalar_select 0, %s7, %s5
  $region1: #{tpu_custom_call.1} parent=0
    #allocation2 [shape = 'u8[4096]{0}', space=vmem, size = 0x1000, scoped, tag = 'input window, operand 0, single buffered']
    #allocation3 [shape = 's32[1]{0}', space=sflag, size = 0x4, scoped, tag = 'scoped memory for tpu_custom_call.1']
    #allocation4 [shape = 's32[1]{0}', space=sflag, size = 0x4, scoped, tag = 'scoped memory for tpu_custom_call.1']
    #allocation5 [shape = 'u8[4096]{0}', space=vmem, size = 0x1000, scoped, tag = 'input window, operand 1, single buffered']
    #allocation6 [shape = 's32[1]{0}', space=sflag, size = 0x4, scoped, tag = 'scoped memory for tpu_custom_call.1']
    #allocation7 [shape = 'u8[1024]{0}', space=vmem, size = 0x400, scoped, tag = 'output window, operand 0, single buffered']
    #allocation8 [shape = 'u8[1024]{0}', space=vmem, size = 0x400, scoped, tag = 'output window, operand 1, single buffered']
    #allocation9 [shape = 's32[1]{0}', space=sflag, size = 0x4, scoped, tag = 'scoped memory for tpu_custom_call.1']
    %9 = vsyncpa [#allocation3], 0
    %10 = vsyncpa [#allocation6], 0
    %11 = vsyncpa [#allocation4], 0
    %12 = vsyncpa [#allocation9], 0
    // Predicated region
    $region2: #{tpu_custom_call.1} parent=1 // pred_check
      _
    $region3: #{tpu_custom_call.1} parent=1 // pred_check_branch
      %14 = sbr.rel (0) target = $region5
    $region4: #{tpu_custom_call.1} parent=1 // pred_region
      %s16 = ssub.s32 128, 128
      %17 = vsyncadd [#allocation3], %s16
      %s18 = sshll.u32 [#allocation2], 4
      %s19 = int_to_ptr.vmem [resolvable:$true] %s18
      %24 = dma.hbm_to_vmem [thread:$0]  %s0, 128, %s19, [#allocation3], 64, 64, 4
    $region5: #{tpu_custom_call.1} parent=1 // pred_fallthru
      _
    // Predicated region
    $region6: #{tpu_custom_call.1} parent=1 // pred_check
      _
    $region7: #{tpu_custom_call.1} parent=1 // pred_check_branch
      %26 = sbr.rel (0) target = $region9
    $region8: #{tpu_custom_call.1} parent=1 // pred_region
      %s28 = ssub.s32 128, 128
      %29 = vsyncadd [#allocation6], %s28
      %s30 = sshll.u32 [#allocation5], 4
      %s31 = int_to_ptr.vmem [resolvable:$true] %s30
      %36 = dma.hbm_to_vmem [thread:$0]  %s1, 128, %s31, [#allocation6], 64, 64, 4
    $region9: #{tpu_custom_call.1} parent=1 // pred_fallthru
      _
    // Predicated region
    $region10: #{tpu_custom_call.1} parent=1 // pred_check
      _
    $region11: #{tpu_custom_call.1} parent=1 // pred_check_branch
      %38 = sbr.rel (0) target = $region13
    $region12: #{tpu_custom_call.1} parent=1 // pred_region
      %39 = dma.done [#allocation3], 128
    $region13: #{tpu_custom_call.1} parent=1 // pred_fallthru
      _
    // Predicated region
    $region14: #{tpu_custom_call.1} parent=1 // pred_check
      _
    $region15: #{tpu_custom_call.1} parent=1 // pred_check_branch
      %41 = sbr.rel (0) target = $region17
    $region16: #{tpu_custom_call.1} parent=1 // pred_region
      %42 = dma.done [#allocation6], 128
    $region17: #{tpu_custom_call.1} parent=1 // pred_fallthru
      _
    %v43 = vld [vmem:[#allocation2] sm:$0xf]
    %v44 = vld [vmem:[#allocation2 + $0x4] sm:$0xf]
    %v45 = vld [vmem:[#allocation5] sm:$0xf]
    %v46 = vld [vmem:[#allocation5 + $0x4] sm:$0xf]
    %v47 = vmul.f32 %v43, %v43
    %v48 = vmul.f32 %v44, %v44
    %vm49 = vcmask 125952
    %v50 = vsel %vm49, %v47, 0.0
    %51 = vadd.xlane.f32.xlu0 %v50
    %v52 = vpop.xlane.xlu0 %51
    %v53 = vsel %vm49, %v48, 0.0
    %54 = vadd.xlane.f32.xlu0 %v53
    %v55 = vpop.xlane.xlu0 %54
    %v56 = vadd.f32 %v52, 1e-12
    %v57 = vadd.f32 %v55, 1e-12
    %v58 = vrsqrt.pop %v56
    %v59 = vrsqrt.pop %v57
    %v60 = vmul.f32 %v45, %v45
    %v61 = vmul.f32 %v46, %v46
    %v62 = vsel %vm49, %v60, 0.0
    %63 = vadd.xlane.f32.xlu0 %v62
    %v64 = vpop.xlane.xlu0 %63
    %v65 = vsel %vm49, %v61, 0.0
    %66 = vadd.xlane.f32.xlu0 %v65
    %v67 = vpop.xlane.xlu0 %66
    %v68 = vadd.f32 %v64, 1e-12
    %v69 = vadd.f32 %v67, 1e-12
    %v70 = vrsqrt.pop %v68
    %v71 = vrsqrt.pop %v69
    %v72 = vmul.f32 %v43, %v58
    %v73 = vmul.f32 %v44, %v59
    %v74 = vmul.f32 %v45, %v70
    %v75 = vmul.f32 %v46, %v71
    %vm76 = vcmask 130048
    %v78 = vsel %vm76, %v72, 0
    %v81 = vsel %vm76, %v74, 0
    %83 = vmatprep.subr.mxu0 0.0
    %84 = vmatpush1.xpose.msra.mxu0 %v81
    %85 = vmatprep.subr.mxu0 0.0
    %86 = vmatpush1.xpose.msra.mxu0 0.0
    %87 = vmatprep.subr.mxu0 0.0
    %88 = vmatpush1.xpose.msra.mxu0 0.0
    %89 = vmatprep.subr.mxu0 0.0
    %90 = vmatpush1.xpose.msra.mxu0 0.0
    %91 = vmatprep.subr.mxu0 0.0
    %92 = vmatpush1.xpose.msra.mxu0 0.0
    %93 = vmatprep.subr.mxu0 0.0
    %94 = vmatpush1.xpose.msra.mxu0 0.0
    %95 = vmatprep.subr.mxu0 0.0
    %96 = vmatpush1.xpose.msra.mxu0 0.0
    %97 = vmatprep.subr.mxu0 0.0
    %98 = vmatpush1.xpose.msra.mxu0 0.0
    %99 = vmatprep.subr.mxu0 0.0
    %100 = vmatpush1.xpose.msra.mxu0 0.0
    %101 = vmatprep.subr.mxu0 0.0
    %102 = vmatpush1.xpose.msra.mxu0 0.0
    %103 = vmatprep.subr.mxu0 0.0
    %104 = vmatpush1.xpose.msra.mxu0 0.0
    %105 = vmatprep.subr.mxu0 0.0
    %106 = vmatpush1.xpose.msra.mxu0 0.0
    %107 = vmatprep.subr.mxu0 0.0
    %108 = vmatpush1.xpose.msra.mxu0 0.0
    %109 = vmatprep.subr.mxu0 0.0
    %110 = vmatpush1.xpose.msra.mxu0 0.0
    %111 = vmatprep.subr.mxu0 0.0
    %112 = vmatpush1.xpose.msra.mxu0 0.0
    %113 = vmatprep.subr.mxu0 0.0
    %114 = vmatpush1.xpose.msra.mxu0 0.0
    %115 = vmatprep.subr.mxu0 0.0
    %116 = vmatpush1.xpose.msra.mxu0 0.0
    %117 = vmatprep.subr.mxu0 0.0
    %118 = vmatpush1.xpose.msra.mxu0 0.0
    %119 = vmatprep.subr.mxu0 0.0
    %120 = vmatpush1.xpose.msra.mxu0 0.0
    %121 = vmatprep.subr.mxu0 0.0
    %122 = vmatpush1.xpose.msra.mxu0 0.0
    %123 = vmatprep.subr.mxu0 0.0
    %124 = vmatpush1.xpose.msra.mxu0 0.0
    %125 = vmatprep.subr.mxu0 0.0
    %126 = vmatpush1.xpose.msra.mxu0 0.0
    %127 = vmatprep.subr.mxu0 0.0
    %128 = vmatpush1.xpose.msra.mxu0 0.0
    %129 = vmatprep.subr.mxu0 0.0
    %130 = vmatpush1.xpose.msra.mxu0 0.0
    %131 = vmatprep.subr.mxu0 0.0
    %132 = vmatpush1.xpose.msra.mxu0 0.0
    %133 = vmatprep.subr.mxu0 0.0
    %134 = vmatpush1.xpose.msra.mxu0 0.0
    %135 = vmatprep.subr.mxu0 0.0
    %136 = vmatpush1.xpose.msra.mxu0 0.0
    %137 = vmatprep.subr.mxu0 0.0
    %138 = vmatpush1.xpose.msra.mxu0 0.0
    %139 = vmatprep.subr.mxu0 0.0
    %140 = vmatpush1.xpose.msra.mxu0 0.0
    %141 = vmatprep.subr.mxu0 0.0
    %142 = vmatpush1.xpose.msra.mxu0 0.0
    %143 = vmatprep.subr.mxu0 0.0
    %144 = vmatpush1.xpose.msra.mxu0 0.0
    %145 = vmatprep.subr.mxu0 0.0
    %146 = vmatpush1.xpose.msra.mxu0 0.0
    %147 = vmatprep.mubr.f32.mxu0 0.0
    %148 = vmatmul.mubr.f32.gmra.mrb[0].mxu0 %v78
    %v149 = vpop.f32.mrb[0].mxu0
    %v150 = vadd.f32 0.0, %v149
    %v151 = vpop.f32.mrb[0].mxu0
    %152 = vdwg.mxu0
    %v154 = vsel %vm76, %v73, 0
    %v157 = vsel %vm76, %v75, 0
    %159 = vmatprep.subr.mxu0 0.0
    %160 = vmatpush1.xpose.msra.mxu0 %v157
    %161 = vmatprep.subr.mxu0 0.0
    %162 = vmatpush1.xpose.msra.mxu0 0.0
    %163 = vmatprep.subr.mxu0 0.0
    %164 = vmatpush1.xpose.msra.mxu0 0.0
    %165 = vmatprep.subr.mxu0 0.0
    %166 = vmatpush1.xpose.msra.mxu0 0.0
    %167 = vmatprep.subr.mxu0 0.0
    %168 = vmatpush1.xpose.msra.mxu0 0.0
    %169 = vmatprep.subr.mxu0 0.0
    %170 = vmatpush1.xpose.msra.mxu0 0.0
    %171 = vmatprep.subr.mxu0 0.0
    %172 = vmatpush1.xpose.msra.mxu0 0.0
    %173 = vmatprep.subr.mxu0 0.0
    %174 = vmatpush1.xpose.msra.mxu0 0.0
    %175 = vmatprep.subr.mxu0 0.0
    %176 = vmatpush1.xpose.msra.mxu0 0.0
    %177 = vmatprep.subr.mxu0 0.0
    %178 = vmatpush1.xpose.msra.mxu0 0.0
    %179 = vmatprep.subr.mxu0 0.0
    %180 = vmatpush1.xpose.msra.mxu0 0.0
    %181 = vmatprep.subr.mxu0 0.0
    %182 = vmatpush1.xpose.msra.mxu0 0.0
    %183 = vmatprep.subr.mxu0 0.0
    %184 = vmatpush1.xpose.msra.mxu0 0.0
    %185 = vmatprep.subr.mxu0 0.0
    %186 = vmatpush1.xpose.msra.mxu0 0.0
    %187 = vmatprep.subr.mxu0 0.0
    %188 = vmatpush1.xpose.msra.mxu0 0.0
    %189 = vmatprep.subr.mxu0 0.0
    %190 = vmatpush1.xpose.msra.mxu0 0.0
    %191 = vmatprep.subr.mxu0 0.0
    %192 = vmatpush1.xpose.msra.mxu0 0.0
    %193 = vmatprep.subr.mxu0 0.0
    %194 = vmatpush1.xpose.msra.mxu0 0.0
    %195 = vmatprep.subr.mxu0 0.0
    %196 = vmatpush1.xpose.msra.mxu0 0.0
    %197 = vmatprep.subr.mxu0 0.0
    %198 = vmatpush1.xpose.msra.mxu0 0.0
    %199 = vmatprep.subr.mxu0 0.0
    %200 = vmatpush1.xpose.msra.mxu0 0.0
    %201 = vmatprep.subr.mxu0 0.0
    %202 = vmatpush1.xpose.msra.mxu0 0.0
    %203 = vmatprep.subr.mxu0 0.0
    %204 = vmatpush1.xpose.msra.mxu0 0.0
    %205 = vmatprep.subr.mxu0 0.0
    %206 = vmatpush1.xpose.msra.mxu0 0.0
    %207 = vmatprep.subr.mxu0 0.0
    %208 = vmatpush1.xpose.msra.mxu0 0.0
    %209 = vmatprep.subr.mxu0 0.0
    %210 = vmatpush1.xpose.msra.mxu0 0.0
    %211 = vmatprep.subr.mxu0 0.0
    %212 = vmatpush1.xpose.msra.mxu0 0.0
    %213 = vmatprep.subr.mxu0 0.0
    %214 = vmatpush1.xpose.msra.mxu0 0.0
    %215 = vmatprep.subr.mxu0 0.0
    %216 = vmatpush1.xpose.msra.mxu0 0.0
    %217 = vmatprep.subr.mxu0 0.0
    %218 = vmatpush1.xpose.msra.mxu0 0.0
    %219 = vmatprep.subr.mxu0 0.0
    %220 = vmatpush1.xpose.msra.mxu0 0.0
    %221 = vmatprep.subr.mxu0 0.0
    %222 = vmatpush1.xpose.msra.mxu0 0.0
    %223 = vmatprep.mubr.f32.mxu0 0.0
    %224 = vmatmul.mubr.f32.gmra.mrb[0].mxu0 %v154
    %v225 = vpop.f32.mrb[0].mxu0
    %v226 = vadd.f32 0.0, %v225
    %v227 = vpop.f32.mrb[0].mxu0
    %228 = vdwg.mxu0
    %vm229 = vcmask 27648
    %v230 = vsel %vm229, %v150, -inf
    %231 = vmax.xlane.f32.xlu0 %v230
    %v232 = vpop.xlane.xlu0 %231
    %v233 = vsel %vm229, %v226, -inf
    %234 = vmax.xlane.f32.xlu0 %v233
    %v235 = vpop.xlane.xlu0 %234
    %v236 = vlaneseq
    %v237 = vand.u32 %v236, 127
    %vm238 = vcmp.ge.f32.partialorder %v150, %v232
    %vm239 = vcmp.ge.f32.partialorder %v226, %v235
    %v240 = vsel %vm238, %v237, 4
    %v241 = vsel %vm239, %v237, 4
    %v242 = vsel %vm229, %v240, 2147483647
    %v243 = vand.u32 %v242, 65535
    %v244 = vshra.s32 %v242, 16
    %v245 = vcvt.s32.f32 %v243
    %v246 = vcvt.s32.f32 %v244
    %247 = vmin.xlane.f32.xlu0 %v246
    %v248 = vpop.xlane.xlu0 %247
    %vm249 = vcmp.eq.f32.partialorder %v246, %v248
    %v250 = vsel %vm249, %v245, inf
    %251 = vmin.xlane.f32.xlu0 %v250
    %v252 = vpop.xlane.xlu0 %251
    %v253 = vcvt.f32.s32 %v252
    %v254 = vcvt.f32.s32 %v248
    %v255 = vshll.u32 %v254, 16
    %v256 = vadd.s32 %v255, %v253
    %v257 = vsel %vm229, %v241, 2147483647
    %v258 = vand.u32 %v257, 65535
    %v259 = vshra.s32 %v257, 16
    %v260 = vcvt.s32.f32 %v258
    %v261 = vcvt.s32.f32 %v259
    %262 = vmin.xlane.f32.xlu0 %v261
    %v263 = vpop.xlane.xlu0 %262
    %vm264 = vcmp.eq.f32.partialorder %v261, %v263
    %v265 = vsel %vm264, %v260, inf
    %266 = vmin.xlane.f32.xlu0 %v265
    %v267 = vpop.xlane.xlu0 %266
    %v268 = vcvt.f32.s32 %v267
    %v269 = vcvt.f32.s32 %v263
    %v270 = vshll.u32 %v269, 16
    %v271 = vadd.s32 %v270, %v268
    %v274 = vlaneseq
    %v275 = vshrl.u32 %v274, 7
    %v276 = vsub.s32 %v237, %v275
    %v277 = vrot.slane %v232, %v276
    %v278 = vlaneseq
    %v279 = vshrl.u32 %v278, 7
    %v280 = vsub.s32 %v237, %v279
    %v281 = vrot.slane %v235, %v280
    %vm282 = vcmask 1041409
    %v283 = vsel %vm282, %v281, %v277
    %vm285 = vcmask 25600
    %286 = vst.msk [vmem:[#allocation7] sm:$0x3] %vm285, %v283
    %v287 = vlaneseq
    %v288 = vshrl.u32 %v287, 7
    %v289 = vsub.s32 %v237, %v288
    %v290 = vrot.slane %v256, %v289
    %v291 = vlaneseq
    %v292 = vshrl.u32 %v291, 7
    %v293 = vsub.s32 %v237, %v292
    %v294 = vrot.slane %v271, %v293
    %v295 = vsel %vm282, %v294, %v290
    %296 = vst.msk [vmem:[#allocation8] sm:$0x3] %vm285, %v295
    // Predicated region
    $region18: #{tpu_custom_call.1} parent=1 // pred_check
      _
    $region19: #{tpu_custom_call.1} parent=1 // pred_check_branch
      %298 = sbr.rel (0) target = $region21
    $region20: #{tpu_custom_call.1} parent=1 // pred_region
      %s300 = ssub.s32 32, 32
      %301 = vsyncadd [#allocation4], %s300
      %s303 = sshll.u32 [#allocation7], 4
      %s304 = int_to_ptr.vmem [resolvable:$true] %s303
      %306 = dma.vmem_to_hbm [thread:$0]  %s304, 32, %s2, [#allocation4]
    $region21: #{tpu_custom_call.1} parent=1 // pred_fallthru
      _
    // Predicated region
    $region22: #{tpu_custom_call.1} parent=1 // pred_check
      _
    $region23: #{tpu_custom_call.1} parent=1 // pred_check_branch
      %308 = sbr.rel (0) target = $region25
    $region24: #{tpu_custom_call.1} parent=1 // pred_region
      %s310 = ssub.s32 32, 32
      %311 = vsyncadd [#allocation9], %s310
      %s313 = sshll.u32 [#allocation8], 4
      %s314 = int_to_ptr.vmem [resolvable:$true] %s313
      %316 = dma.vmem_to_hbm [thread:$0]  %s314, 32, %s3, [#allocation9]
    $region25: #{tpu_custom_call.1} parent=1 // pred_fallthru
      _
    // Predicated region
    $region26: #{tpu_custom_call.1} parent=1 // pred_check
      _
    $region27: #{tpu_custom_call.1} parent=1 // pred_check_branch
      %318 = sbr.rel (0) target = $region29
    $region28: #{tpu_custom_call.1} parent=1 // pred_region
      %319 = dma.done [#allocation4], 32
    $region29: #{tpu_custom_call.1} parent=1 // pred_fallthru
      _
    // Predicated region
    $region30: #{tpu_custom_call.1} parent=1 // pred_check
      _
    $region31: #{tpu_custom_call.1} parent=1 // pred_check_branch
      %321 = sbr.rel (0) target = $region33
    $region32: #{tpu_custom_call.1} parent=1 // pred_region
      %322 = dma.done [#allocation9], 32
    $region33: #{tpu_custom_call.1} parent=1 // pred_fallthru
      _
    %323 = vsyncpa [#allocation3], 1
    %324 = vsyncpa [#allocation6], 1
    %325 = vsyncpa [#allocation4], 1
    %326 = vsyncpa [#allocation9], 1

</llo_original>
